<compile_context>
chip_gen: v6e
topology: v6e:2x2x1
jax: 0.10.0
libtpu: 0.0.40
codegen_flags: <defaults>
</compile_context>

<pallas_src>
from functools import partial

import jax
import jax.numpy as jnp
from jax.experimental import pallas as pl
from jax.experimental.pallas import tpu as pltpu


def _leaky_relu(v, slope=0.2):
    return jnp.where(v >= 0, v, slope * v)


def _make_residual_block_kernel(kernel_size, dilations_list, negative_slope=0.2):
    """Builds the fused kernel for a fixed (static) block structure."""
    K = kernel_size

    def kernel(x_ref, w_ref, b_ref, out_ref):
        # x_ref  : (1, C, T)            one batch element
        # w_ref  : (n_convs, C, K*C)    packed conv weights (taps folded into K axis)
        # b_ref  : (n_convs, C, 1)      conv biases
        # out_ref: (1, C, T)
        C = x_ref.shape[1]
        T = x_ref.shape[2]

        h = x_ref[0].astype(jnp.float32)          # (C, T) running activation
        conv_idx = 0
        for dilations in dilations_list:          # static unroll over layers
            layer_in = h
            y = layer_in
            for d in dilations:                   # static unroll over dilated convs
                a = _leaky_relu(y, negative_slope)            # (C, T), VPU
                r = (K - 1) * d // 2                          # 'same' pad radius
                if r > 0:
                    z = jnp.zeros((C, r), jnp.float32)
                    a_pad = jnp.concatenate([z, a, z], axis=1)  # (C, T + 2r)
                else:
                    a_pad = a
                # im2col: fold the K taps into the contraction (sublane) axis.
                im2col = jnp.concatenate(
                    [a_pad[:, j * d:j * d + T] for j in range(K)], axis=0)  # (K*C, T)
                w = w_ref[conv_idx].astype(jnp.float32)        # (C, K*C)
                b = b_ref[conv_idx].astype(jnp.float32)        # (C, 1)
                # Single MXU push per conv, f32 accumulation.
                y = jnp.dot(w, im2col, preferred_element_type=jnp.float32) + b
                conv_idx += 1
            h = layer_in + y                                   # residual add
        out_ref[0] = h.astype(out_ref.dtype)

    return kernel


def residual_block(x, weights, biases, kernel_size, dilations_list):
    """x: (B, C, T); weights[i]: (C, C, K) (PyTorch Conv1d layout); biases[i]: (C,)."""
    B, C, T = x.shape
    K = kernel_size
    assert K % 2 == 1, "centered 'same' padding implemented for odd kernel sizes"
    n_convs = sum(len(d) for d in dilations_list)
    assert len(weights) == n_convs and len(biases) == n_convs

    # Pack: W[o, i, j] -> W_packed[o, j*C + i]  (matches the im2col row ordering).
    w_packed = jnp.stack(
        [jnp.transpose(w, (0, 2, 1)).reshape(C, K * C) for w in weights])      # (n_convs, C, K*C)
    b_packed = jnp.stack([b.reshape(C, 1) for b in biases])                    # (n_convs, C, 1)

    kernel = _make_residual_block_kernel(
        kernel_size, tuple(tuple(int(d) for d in ds) for ds in dilations_list))

    out = pl.pallas_call(
        kernel,
        out_shape=jax.ShapeDtypeStruct((B, C, T), x.dtype),
        grid=(B,),
        in_specs=[
            pl.BlockSpec((1, C, T), lambda i: (i, 0, 0)),                 # x (per batch)
            pl.BlockSpec((n_convs, C, K * C), lambda i: (0, 0, 0)),       # packed weights
            pl.BlockSpec((n_convs, C, 1), lambda i: (0, 0, 0)),           # packed biases
        ],
        out_specs=pl.BlockSpec((1, C, T), lambda i: (i, 0, 0)),
        compiler_params=pltpu.CompilerParams(
            dimension_semantics=("parallel",)),
    )(x, w_packed, b_packed)
    return out
    # TODO(synk): streaming/cached-state mode (CachedPadding1d state carried across
    # calls) has no single-call Pallas equivalent; offline centered-padding
    # semantics (all cumulative delays == 0) are implemented instead.


# ---------------- pure-JAX reference for verification ----------------
def _ref_conv1d_same(x, w, b, dilation):
    # x: (B, C, T), w: (Cout, Cin, K), b: (Cout,)
    K = w.shape[-1]
    r = (K - 1) * dilation // 2
    T = x.shape[-1]
    xp = jnp.pad(x, ((0, 0), (0, 0), (r, r)))
    out = jnp.zeros((x.shape[0], w.shape[0], T), jnp.float32)
    for j in range(K):
        out = out + jnp.einsum(
            "oi,bit->bot", w[:, :, j], xp[:, :, j * dilation:j * dilation + T],
            precision=jax.lax.Precision.HIGHEST)
    return out + b[None, :, None]


def _ref_forward(x, weights, biases, kernel_size, dilations_list):
    idx = 0
    h = x
    for dilations in dilations_list:
        layer_in = h
        y = layer_in
        for d in dilations:
            y = _leaky_relu(y)
            y = _ref_conv1d_same(y, weights[idx], biases[idx], d)
            idx += 1
        h = layer_in + y
    return h


if __name__ == "__main__":
    # Small shapes; T = 128 keeps the lane axis full (unmasked stores).
    B, C, T = 2, 8, 128
    kernel_size = 3
    dilations_list = ((1, 3), (1, 3))   # two ResidualLayers, two dilated convs each
    n_convs = sum(len(d) for d in dilations_list)

    key = jax.random.PRNGKey(0)
    keys = jax.random.split(key, 1 + 2 * n_convs)

    x = jax.random.normal(keys[0], (B, C, T), jnp.float32)
    weights = [0.1 * jax.random.normal(keys[1 + 2 * i], (C, C, kernel_size), jnp.float32)
               for i in range(n_convs)]
    biases = [0.1 * jax.random.normal(keys[2 + 2 * i], (C,), jnp.float32)
              for i in range(n_convs)]

    out = residual_block(x, weights, biases, kernel_size, dilations_list)
    out = jax.block_until_ready(out)

    ref = _ref_forward(x, weights, biases, kernel_size, dilations_list)
    assert out.shape == (B, C, T)
    assert jnp.allclose(out, ref, atol=1e-3, rtol=1e-3), "mismatch vs JAX reference"

    print("KERNEL_OK")
</pallas_src>

<mosaic_0001>
module attributes {stable_mosaic.version = 11 : i64} {
  func.func @kernel(%arg0: i32, %arg1: memref<1x8x128xf32, #tpu.memory_space<vmem>>, %arg2: memref<4x8x24xf32, #tpu.memory_space<vmem>>, %arg3: memref<4x8x1xf32, #tpu.memory_space<vmem>>, %arg4: memref<1x8x128xf32, #tpu.memory_space<vmem>>) attributes {dimension_semantics = [#tpu.dimension_semantics<parallel>], iteration_bounds = array<i64: 2>, scalar_prefetch = 0 : i64, scratch_operands = 0 : i64, tpu.core_type = #tpu.core_type<tc>, window_params = [{transform_indices = @transform_0, window_bounds = array<i64: 1, 8, 128>}, {pipeline_mode = #tpu.pipeline_mode<synchronous>, transform_indices = @transform_1, window_bounds = array<i64: 4, 8, 24>}, {pipeline_mode = #tpu.pipeline_mode<synchronous>, transform_indices = @transform_2, window_bounds = array<i64: 4, 8, 1>}, {transform_indices = @transform_3, window_bounds = array<i64: 1, 8, 128>}]} {
    %c0 = arith.constant 0 : index
    %c0_0 = arith.constant 0 : index
    %c0_1 = arith.constant 0 : index
    %0 = vector.load %arg1[%c0, %c0_0, %c0_1] : memref<1x8x128xf32, #tpu.memory_space<vmem>>, vector<1x8x128xf32>
    %1 = vector.shape_cast %0 : vector<1x8x128xf32> to vector<8x128xf32>
    %cst = arith.constant 0.000000e+00 : f32
    %2 = vector.broadcast %cst : f32 to vector<8x128xf32>
    %3 = arith.cmpf oge, %1, %2 : vector<8x128xf32>
    %cst_2 = arith.constant 2.000000e-01 : f32
    %4 = vector.broadcast %cst_2 : f32 to vector<8x128xf32>
    %5 = arith.mulf %4, %1 : vector<8x128xf32>
    %6 = arith.select %3, %1, %5 : vector<8x128xi1>, vector<8x128xf32>
    %cst_3 = arith.constant 0.000000e+00 : f32
    %7 = vector.broadcast %cst_3 : f32 to vector<8x1xf32>
    %8 = tpu.concatenate %7, %6, %7 in 1 : vector<8x1xf32>, vector<8x128xf32>, vector<8x1xf32> -> vector<8x130xf32>
    %9 = vector.extract_strided_slice %8 {offsets = [0, 0], sizes = [8, 128], strides = [1, 1]} : vector<8x130xf32> to vector<8x128xf32>
    %10 = vector.extract_strided_slice %8 {offsets = [0, 1], sizes = [8, 128], strides = [1, 1]} : vector<8x130xf32> to vector<8x128xf32>
    %11 = vector.extract_strided_slice %8 {offsets = [0, 2], sizes = [8, 128], strides = [1, 1]} : vector<8x130xf32> to vector<8x128xf32>
    %12 = tpu.concatenate %9, %10, %11 in 0 : vector<8x128xf32>, vector<8x128xf32>, vector<8x128xf32> -> vector<24x128xf32>
    %c0_4 = arith.constant 0 : index
    %c0_5 = arith.constant 0 : index
    %c0_6 = arith.constant 0 : index
    %13 = vector.load %arg2[%c0_4, %c0_5, %c0_6] : memref<4x8x24xf32, #tpu.memory_space<vmem>>, vector<1x8x24xf32>
    %14 = vector.shape_cast %13 : vector<1x8x24xf32> to vector<8x24xf32>
    %c0_7 = arith.constant 0 : index
    %c0_8 = arith.constant 0 : index
    %c0_9 = arith.constant 0 : index
    %15 = vector.load %arg3[%c0_7, %c0_8, %c0_9] : memref<4x8x1xf32, #tpu.memory_space<vmem>>, vector<1x8x1xf32>
    %16 = vector.shape_cast %15 : vector<1x8x1xf32> to vector<8x1xf32>
    %cst_10 = arith.constant dense<0.000000e+00> : vector<8x128xf32>
    %17 = tpu.matmul %14, %12, %cst_10 {dimension_numbers = #tpu.dot_dimension_numbers<[1], [0], [0], [1], [0, 0, 1, 1], [], []>} : vector<8x24xf32>, vector<24x128xf32>, vector<8x128xf32> -> vector<8x128xf32>
    %18 = vector.broadcast %16 : vector<8x1xf32> to vector<8x128xf32>
    %19 = arith.addf %17, %18 : vector<8x128xf32>
    %cst_11 = arith.constant 0.000000e+00 : f32
    %20 = vector.broadcast %cst_11 : f32 to vector<8x128xf32>
    %21 = arith.cmpf oge, %19, %20 : vector<8x128xf32>
    %cst_12 = arith.constant 2.000000e-01 : f32
    %22 = vector.broadcast %cst_12 : f32 to vector<8x128xf32>
    %23 = arith.mulf %22, %19 : vector<8x128xf32>
    %24 = arith.select %21, %19, %23 : vector<8x128xi1>, vector<8x128xf32>
    %cst_13 = arith.constant 0.000000e+00 : f32
    %25 = vector.broadcast %cst_13 : f32 to vector<8x3xf32>
    %26 = tpu.concatenate %25, %24, %25 in 1 : vector<8x3xf32>, vector<8x128xf32>, vector<8x3xf32> -> vector<8x134xf32>
    %27 = vector.extract_strided_slice %26 {offsets = [0, 0], sizes = [8, 128], strides = [1, 1]} : vector<8x134xf32> to vector<8x128xf32>
    %28 = vector.extract_strided_slice %26 {offsets = [0, 3], sizes = [8, 128], strides = [1, 1]} : vector<8x134xf32> to vector<8x128xf32>
    %29 = vector.extract_strided_slice %26 {offsets = [0, 6], sizes = [8, 128], strides = [1, 1]} : vector<8x134xf32> to vector<8x128xf32>
    %30 = tpu.concatenate %27, %28, %29 in 0 : vector<8x128xf32>, vector<8x128xf32>, vector<8x128xf32> -> vector<24x128xf32>
    %c1 = arith.constant 1 : index
    %c0_14 = arith.constant 0 : index
    %c0_15 = arith.constant 0 : index
    %31 = vector.load %arg2[%c1, %c0_14, %c0_15] : memref<4x8x24xf32, #tpu.memory_space<vmem>>, vector<1x8x24xf32>
    %32 = vector.shape_cast %31 : vector<1x8x24xf32> to vector<8x24xf32>
    %c1_16 = arith.constant 1 : index
    %c0_17 = arith.constant 0 : index
    %c0_18 = arith.constant 0 : index
    %33 = vector.load %arg3[%c1_16, %c0_17, %c0_18] : memref<4x8x1xf32, #tpu.memory_space<vmem>>, vector<1x8x1xf32>
    %34 = vector.shape_cast %33 : vector<1x8x1xf32> to vector<8x1xf32>
    %cst_19 = arith.constant dense<0.000000e+00> : vector<8x128xf32>
    %35 = tpu.matmul %32, %30, %cst_19 {dimension_numbers = #tpu.dot_dimension_numbers<[1], [0], [0], [1], [0, 0, 1, 1], [], []>} : vector<8x24xf32>, vector<24x128xf32>, vector<8x128xf32> -> vector<8x128xf32>
    %36 = vector.broadcast %34 : vector<8x1xf32> to vector<8x128xf32>
    %37 = arith.addf %35, %36 : vector<8x128xf32>
    %38 = arith.addf %1, %37 : vector<8x128xf32>
    %cst_20 = arith.constant 0.000000e+00 : f32
    %39 = vector.broadcast %cst_20 : f32 to vector<8x128xf32>
    %40 = arith.cmpf oge, %38, %39 : vector<8x128xf32>
    %cst_21 = arith.constant 2.000000e-01 : f32
    %41 = vector.broadcast %cst_21 : f32 to vector<8x128xf32>
    %42 = arith.mulf %41, %38 : vector<8x128xf32>
    %43 = arith.select %40, %38, %42 : vector<8x128xi1>, vector<8x128xf32>
    %cst_22 = arith.constant 0.000000e+00 : f32
    %44 = vector.broadcast %cst_22 : f32 to vector<8x1xf32>
    %45 = tpu.concatenate %44, %43, %44 in 1 : vector<8x1xf32>, vector<8x128xf32>, vector<8x1xf32> -> vector<8x130xf32>
    %46 = vector.extract_strided_slice %45 {offsets = [0, 0], sizes = [8, 128], strides = [1, 1]} : vector<8x130xf32> to vector<8x128xf32>
    %47 = vector.extract_strided_slice %45 {offsets = [0, 1], sizes = [8, 128], strides = [1, 1]} : vector<8x130xf32> to vector<8x128xf32>
    %48 = vector.extract_strided_slice %45 {offsets = [0, 2], sizes = [8, 128], strides = [1, 1]} : vector<8x130xf32> to vector<8x128xf32>
    %49 = tpu.concatenate %46, %47, %48 in 0 : vector<8x128xf32>, vector<8x128xf32>, vector<8x128xf32> -> vector<24x128xf32>
    %c2 = arith.constant 2 : index
    %c0_23 = arith.constant 0 : index
    %c0_24 = arith.constant 0 : index
    %50 = vector.load %arg2[%c2, %c0_23, %c0_24] : memref<4x8x24xf32, #tpu.memory_space<vmem>>, vector<1x8x24xf32>
    %51 = vector.shape_cast %50 : vector<1x8x24xf32> to vector<8x24xf32>
    %c2_25 = arith.constant 2 : index
    %c0_26 = arith.constant 0 : index
    %c0_27 = arith.constant 0 : index
    %52 = vector.load %arg3[%c2_25, %c0_26, %c0_27] : memref<4x8x1xf32, #tpu.memory_space<vmem>>, vector<1x8x1xf32>
    %53 = vector.shape_cast %52 : vector<1x8x1xf32> to vector<8x1xf32>
    %cst_28 = arith.constant dense<0.000000e+00> : vector<8x128xf32>
    %54 = tpu.matmul %51, %49, %cst_28 {dimension_numbers = #tpu.dot_dimension_numbers<[1], [0], [0], [1], [0, 0, 1, 1], [], []>} : vector<8x24xf32>, vector<24x128xf32>, vector<8x128xf32> -> vector<8x128xf32>
    %55 = vector.broadcast %53 : vector<8x1xf32> to vector<8x128xf32>
    %56 = arith.addf %54, %55 : vector<8x128xf32>
    %cst_29 = arith.constant 0.000000e+00 : f32
    %57 = vector.broadcast %cst_29 : f32 to vector<8x128xf32>
    %58 = arith.cmpf oge, %56, %57 : vector<8x128xf32>
    %cst_30 = arith.constant 2.000000e-01 : f32
    %59 = vector.broadcast %cst_30 : f32 to vector<8x128xf32>
    %60 = arith.mulf %59, %56 : vector<8x128xf32>
    %61 = arith.select %58, %56, %60 : vector<8x128xi1>, vector<8x128xf32>
    %cst_31 = arith.constant 0.000000e+00 : f32
    %62 = vector.broadcast %cst_31 : f32 to vector<8x3xf32>
    %63 = tpu.concatenate %62, %61, %62 in 1 : vector<8x3xf32>, vector<8x128xf32>, vector<8x3xf32> -> vector<8x134xf32>
    %64 = vector.extract_strided_slice %63 {offsets = [0, 0], sizes = [8, 128], strides = [1, 1]} : vector<8x134xf32> to vector<8x128xf32>
    %65 = vector.extract_strided_slice %63 {offsets = [0, 3], sizes = [8, 128], strides = [1, 1]} : vector<8x134xf32> to vector<8x128xf32>
    %66 = vector.extract_strided_slice %63 {offsets = [0, 6], sizes = [8, 128], strides = [1, 1]} : vector<8x134xf32> to vector<8x128xf32>
    %67 = tpu.concatenate %64, %65, %66 in 0 : vector<8x128xf32>, vector<8x128xf32>, vector<8x128xf32> -> vector<24x128xf32>
    %c3 = arith.constant 3 : index
    %c0_32 = arith.constant 0 : index
    %c0_33 = arith.constant 0 : index
    %68 = vector.load %arg2[%c3, %c0_32, %c0_33] : memref<4x8x24xf32, #tpu.memory_space<vmem>>, vector<1x8x24xf32>
    %69 = vector.shape_cast %68 : vector<1x8x24xf32> to vector<8x24xf32>
    %c3_34 = arith.constant 3 : index
    %c0_35 = arith.constant 0 : index
    %c0_36 = arith.constant 0 : index
    %70 = vector.load %arg3[%c3_34, %c0_35, %c0_36] : memref<4x8x1xf32, #tpu.memory_space<vmem>>, vector<1x8x1xf32>
    %71 = vector.shape_cast %70 : vector<1x8x1xf32> to vector<8x1xf32>
    %cst_37 = arith.constant dense<0.000000e+00> : vector<8x128xf32>
    %72 = tpu.matmul %69, %67, %cst_37 {dimension_numbers = #tpu.dot_dimension_numbers<[1], [0], [0], [1], [0, 0, 1, 1], [], []>} : vector<8x24xf32>, vector<24x128xf32>, vector<8x128xf32> -> vector<8x128xf32>
    %73 = vector.broadcast %71 : vector<8x1xf32> to vector<8x128xf32>
    %74 = arith.addf %72, %73 : vector<8x128xf32>
    %75 = arith.addf %38, %74 : vector<8x128xf32>
    %c0_38 = arith.constant 0 : index
    %c0_39 = arith.constant 0 : index
    %c0_40 = arith.constant 0 : index
    %76 = vector.load %arg4[%c0_38, %c0_39, %c0_40] : memref<1x8x128xf32, #tpu.memory_space<vmem>>, vector<1x8x128xf32>
    %77 = vector.shape_cast %76 : vector<1x8x128xf32> to vector<8x128xf32>
    %78 = vector.shape_cast %75 : vector<8x128xf32> to vector<1x8x128xf32>
    tpu.vector_store %arg4[%c0_38, %c0_39, %c0_40], %78 {strides = array<i32>} : memref<1x8x128xf32, #tpu.memory_space<vmem>>, vector<1x8x128xf32>,
    return
  }
  func.func @transform_0(%arg0: i32) -> (i32, i32, i32) {
    %c0_i32 = arith.constant 0 : i32
    %c0_i32_0 = arith.constant 0 : i32
    %c0_i32_1 = arith.constant 0 : i32
    return %arg0, %c0_i32, %c0_i32_0 : i32, i32, i32
  }
  func.func @transform_1(%arg0: i32) -> (i32, i32, i32) {
    %c0_i32 = arith.constant 0 : i32
    %c0_i32_0 = arith.constant 0 : i32
    %c0_i32_1 = arith.constant 0 : i32
    %c0_i32_2 = arith.constant 0 : i32
    return %c0_i32, %c0_i32_0, %c0_i32_1 : i32, i32, i32
  }
  func.func @transform_2(%arg0: i32) -> (i32, i32, i32) {
    %c0_i32 = arith.constant 0 : i32
    %c0_i32_0 = arith.constant 0 : i32
    %c0_i32_1 = arith.constant 0 : i32
    %c0_i32_2 = arith.constant 0 : i32
    return %c0_i32, %c0_i32_0, %c0_i32_1 : i32, i32, i32
  }
  func.func @transform_3(%arg0: i32) -> (i32, i32, i32) {
    %c0_i32 = arith.constant 0 : i32
    %c0_i32_0 = arith.constant 0 : i32
    %c0_i32_1 = arith.constant 0 : i32
    return %arg0, %c0_i32, %c0_i32_0 : i32, i32, i32
  }
}

</mosaic_0001>

<llo_original>
// kernel: tpu_custom_call.1
$region0: #{tpu_custom_call.1}
  #allocation0 [shape = 'u32[]', space=smem, size = 0x4, offset = 0x4, fixed_abs, tag = 'smem constant byte address 0x4 - core index']
  #allocation1 [shape = 'u32[144,128]{1,0:T(1,128)}', space=vmem, size = 0x12000, scoped, tag = 'internal scratch']
  %s0 = inlined_call_operand.hbm [shape: f32[2,8,128], index: 0, kind: input, shape index: {}]
  %s1 = inlined_call_operand.vmem [shape: f32[4,8,24], index: 1, kind: input, shape index: {}]
  %s2 = inlined_call_operand.vmem [shape: f32[4,8,1], index: 2, kind: input, shape index: {}]
  %s3 = inlined_call_operand.hbm [shape: f32[2,8,128], index: 3, kind: output, shape index: {}]
  %s4 = sld [smem:[#allocation0]]
  $region49: #{tpu_custom_call.1} parent=0
    _
  %s6 = ssub.s32 1, %s4
  %s7 = scalar_select 0, %s6, %s4
  $region1: #{tpu_custom_call.1} parent=0
    #allocation2 [shape = 'u8[8192]{0}', space=vmem, size = 0x2000, scoped, tag = 'input window, operand 0']
    #allocation3 [shape = 's32[2]{0}', space=sflag, size = 0x8, scoped, tag = 'scoped memory for tpu_custom_call.1']
    #allocation4 [shape = 's32[2]{0}', space=sflag, size = 0x8, scoped, tag = 'scoped memory for tpu_custom_call.1']
    #allocation5 [shape = 'u8[8192]{0}', space=vmem, size = 0x2000, scoped, tag = 'output window, operand 0']
    %8 = vsyncpa [#allocation3], 0
    %s9 = scalar_lea.sflag [#allocation3], 1
    %10 = vsyncpa %s9, 0
    %11 = vsyncpa [#allocation4], 0
    %s12 = scalar_lea.sflag [#allocation4], 1
    %13 = vsyncpa %s12, 0
    loop: start=0, step=1, limit=4
    $region2: #{tpu_custom_call.1} parent=1 // loop_pre_header
      _
    $region3: #{tpu_custom_call.1} parent=1 // loop_header
      %s15 = sphi 0, %s19
      %p16 = scmp.ge.s32.totalorder %s15, 4
      %s25 = sphi 0, %s27
      %s28 = sphi 0, %s25
      %s29 = sphi 0, %s28
      %s45 = sphi 0, %s29
      %s49 = sphi 0, %s49
      %s51 = sphi 0, %s49
      %s52 = sphi 0, %s51
      %s66 = sphi 0, %s52
      %s70 = sphi 0, %s70
      %s72 = sphi 0, %s70
      %s73 = sphi 0, %s72
      %s87 = sphi 0, %s73
      %s93 = sphi 0, %s95
      %s96 = sphi 0, %s93
      %s97 = sphi 0, %s96
      %s113 = sphi 0, %s97
    $region4: #{tpu_custom_call.1} parent=1 // loop_header_branch
      %18 = sbr.rel (%p16) target = $region8
    $region5: #{tpu_custom_call.1} parent=1 // loop_body
      %s20 = ssub.s32 %s15, 1
      %s21 = ssub.s32 %s15, 2
      %s22 = sadd.s32 %s15, 1
      %s23 = ssub.s32 %s15, %s22
      %p24 = scmp.eq.s32.totalorder %s23, 0
      %s26 = sadd.s32 %s25, 1
      %s27 = scalar_select %p24, %s25, %s26
      %p30 = pneg %p24
      %p31 = scmp.eq.s32.totalorder %s15, 1
      %p32 = por %p30, %p31
      %p33 = scmp.ne.s32.totalorder %s25, %s28
      %p34 = scmp.eq.s32.totalorder %s15, 0
      %p35 = por %p33, %p34
      %p36 = scmp.ne.s32.totalorder %s25, %s28
      %p37 = scmp.eq.s32.totalorder %s20, 1
      %p38 = por %p36, %p37
      %p39 = scmp.ne.s32.totalorder %s28, %s29
      %p40 = scmp.eq.s32.totalorder %s20, 0
      %p41 = por %p39, %p40
      %p42 = scmp.ne.s32.totalorder %s28, %s29
      %p43 = scmp.eq.s32.totalorder %s21, 1
      %p44 = por %p42, %p43
      %p46 = scmp.ne.s32.totalorder %s29, %s45
      %p47 = scmp.eq.s32.totalorder %s21, 0
      %p48 = por %p46, %p47
      %s50 = sadd.s32 %s49, 1
      %p53 = scmp.eq.s32.totalorder %s15, 1
      %p54 = scmp.ne.s32.totalorder %s49, %s51
      %p55 = scmp.eq.s32.totalorder %s15, 0
      %p56 = por %p54, %p55
      %p57 = scmp.ne.s32.totalorder %s49, %s51
      %p58 = scmp.eq.s32.totalorder %s20, 1
      %p59 = por %p57, %p58
      %p60 = scmp.ne.s32.totalorder %s51, %s52
      %p61 = scmp.eq.s32.totalorder %s20, 0
      %p62 = por %p60, %p61
      %p63 = scmp.ne.s32.totalorder %s51, %s52
      %p64 = scmp.eq.s32.totalorder %s21, 1
      %p65 = por %p63, %p64
      %p67 = scmp.ne.s32.totalorder %s52, %s66
      %p68 = scmp.eq.s32.totalorder %s21, 0
      %p69 = por %p67, %p68
      %s71 = sadd.s32 %s70, 1
      %p74 = scmp.eq.s32.totalorder %s15, 1
      %p75 = scmp.ne.s32.totalorder %s70, %s72
      %p76 = scmp.eq.s32.totalorder %s15, 0
      %p77 = por %p75, %p76
      %p78 = scmp.ne.s32.totalorder %s70, %s72
      %p79 = scmp.eq.s32.totalorder %s20, 1
      %p80 = por %p78, %p79
      %p81 = scmp.ne.s32.totalorder %s72, %s73
      %p82 = scmp.eq.s32.totalorder %s20, 0
      %p83 = por %p81, %p82
      %p84 = scmp.ne.s32.totalorder %s72, %s73
      %p85 = scmp.eq.s32.totalorder %s21, 1
      %p86 = por %p84, %p85
      %p88 = scmp.ne.s32.totalorder %s73, %s87
      %p89 = scmp.eq.s32.totalorder %s21, 0
      %p90 = por %p88, %p89
      %s91 = ssub.s32 %s15, %s22
      %p92 = scmp.eq.s32.totalorder %s91, 0
      %s94 = sadd.s32 %s93, 1
      %s95 = scalar_select %p92, %s93, %s94
      %p98 = pneg %p92
      %p99 = scmp.eq.s32.totalorder %s15, 1
      %p100 = por %p98, %p99
      %p101 = scmp.ne.s32.totalorder %s93, %s96
      %p102 = scmp.eq.s32.totalorder %s15, 0
      %p103 = por %p101, %p102
      %p104 = scmp.ne.s32.totalorder %s93, %s96
      %p105 = scmp.eq.s32.totalorder %s20, 1
      %p106 = por %p104, %p105
      %p107 = scmp.ne.s32.totalorder %s96, %s97
      %p108 = scmp.eq.s32.totalorder %s20, 0
      %p109 = por %p107, %p108
      %p110 = scmp.ne.s32.totalorder %s96, %s97
      %p111 = scmp.eq.s32.totalorder %s21, 1
      %p112 = por %p110, %p111
      %p114 = scmp.ne.s32.totalorder %s97, %s113
      %p115 = scmp.eq.s32.totalorder %s21, 0
      %p116 = por %p114, %p115
      %p117 = scmp.le.s32.totalorder 1, %s15
      %p118 = scmp.lt.s32.totalorder %s15, 3
      %p119 = pnand %p117, %p118
      %p120 = pneg %p119
      // Predicated region
      $region9: #{tpu_custom_call.1} parent=5 // pred_check
        _
      $region10: #{tpu_custom_call.1} parent=5 // pred_check_branch
        %122 = sbr.rel (%p119) target = $region12
      $region11: #{tpu_custom_call.1} parent=5 // pred_region
        %s123 = ssub.s32 %s15, 1
        // Predicated region
        $region13: #{tpu_custom_call.1} parent=11 // pred_check
          %p124 = pneg %p62
        $region14: #{tpu_custom_call.1} parent=11 // pred_check_branch
          %126 = sbr.rel (%p124) target = $region16
        $region15: #{tpu_custom_call.1} parent=11 // pred_region
          _
        $region16: #{tpu_custom_call.1} parent=11 // pred_fallthru
          _
        // Predicated region
        $region17: #{tpu_custom_call.1} parent=11 // pred_check
          %p127 = pneg %p83
        $region18: #{tpu_custom_call.1} parent=11 // pred_check_branch
          %129 = sbr.rel (%p127) target = $region20
        $region19: #{tpu_custom_call.1} parent=11 // pred_region
          _
        $region20: #{tpu_custom_call.1} parent=11 // pred_fallthru
          _
      $region12: #{tpu_custom_call.1} parent=5 // pred_fallthru
        _
      %p130 = scmp.lt.s32.totalorder %s15, 2
      // Predicated region
      $region21: #{tpu_custom_call.1} parent=5 // pred_check
        %p131 = pneg %p130
      $region22: #{tpu_custom_call.1} parent=5 // pred_check_branch
        %133 = sbr.rel (%p131) target = $region24
      $region23: #{tpu_custom_call.1} parent=5 // pred_region
        // Predicated region
        $region25: #{tpu_custom_call.1} parent=23 // pred_check
          %p134 = pneg %p35
        $region26: #{tpu_custom_call.1} parent=23 // pred_check_branch
          %136 = sbr.rel (%p134) target = $region28
        $region27: #{tpu_custom_call.1} parent=23 // pred_region
          %s137 = sand.u32 %s25, 1
          %s138 = scalar_lea.sflag [#allocation3], %s137
          %s139 = sand.u32 %s25, 1
          %s140 = smul.addr %s139, 8
          %s141 = scalar_lea.vmem [#allocation2], %s140
          %s143 = ssub.s32 128, 128
          %144 = vsyncadd %s138, %s143
          %s145 = smul.addr %s15, 128
          %s146 = scalar_lea.hbm %s0, %s145
          %s148 = sshll.u32 %s141, 4
          %s149 = int_to_ptr.vmem [resolvable:$true] %s148
          %151 = dma.hbm_to_vmem [thread:$0]  %s146, 128, %s149, %s138
        $region28: #{tpu_custom_call.1} parent=23 // pred_fallthru
          _
      $region24: #{tpu_custom_call.1} parent=5 // pred_fallthru
        _
      %p152 = scmp.le.s32.totalorder 1, %s15
      %p153 = scmp.lt.s32.totalorder %s15, 3
      %p154 = pnand %p152, %p153
      %p155 = pneg %p154
      // Predicated region
      $region29: #{tpu_custom_call.1} parent=5 // pred_check
        _
      $region30: #{tpu_custom_call.1} parent=5 // pred_check_branch
        %157 = sbr.rel (%p154) target = $region32
      $region31: #{tpu_custom_call.1} parent=5 // pred_region
        %s158 = ssub.s32 %s15, 1
        %s159 = sand.u32 %s28, 1
        %s160 = scalar_lea.sflag [#allocation3], %s159
        %s161 = sand.u32 %s28, 1
        %s162 = smul.addr %s161, 8
        %s163 = scalar_lea.vmem [#allocation2], %s162
        // Predicated region
        $region33: #{tpu_custom_call.1} parent=31 // pred_check
          %p164 = pneg %p41
        $region34: #{tpu_custom_call.1} parent=31 // pred_check_branch
          %166 = sbr.rel (%p164) target = $region36
        $region35: #{tpu_custom_call.1} parent=31 // pred_region
          %167 = dma.done %s160, 128
        $region36: #{tpu_custom_call.1} parent=31 // pred_fallthru
          _
        %s168 = sand.u32 %s28, 1
        %s169 = scalar_lea.sflag [#allocation3], %s168
        %s170 = sand.u32 %s28, 1
        %s171 = smul.addr %s170, 8
        %s172 = scalar_lea.vmem [#allocation2], %s171
        %p173 = pneg %p41
        %p174 = pneg %p38
        %p175 = pneg %p62
        %p176 = pneg %p59
        %p177 = pneg %p83
        %p178 = pneg %p80
        %p179 = pneg %p109
        %p180 = pneg %p106
        %s181 = sand.u32 %s96, 1
        %s182 = scalar_lea.sflag [#allocation4], %s181
        %s183 = sand.u32 %s96, 1
        %s184 = smul.addr %s183, 8
        %s185 = scalar_lea.vmem [#allocation5], %s184
        %v186 = vld [vmem:[%s163] sm:$0xff]
        %vm187 = vcmp.ge.f32.partialorder %v186, 0.0
        %v188 = vmul.f32 %v186, 0.2
        %v189 = vsel %vm187, %v186, %v188
        %191 = vrot.lane.b32.xlu0 %v189, 1
        %v192 = vpop.permute.xlu0 %191
        %vm194 = vcmask 7168
        %v195 = vsel %vm194, 0.0, %v192
        %v196 = vsel %vm194, %v192, 0.0
        %199 = vrot.lane.b32.xlu0 %v195, 127
        %v200 = vpop.permute.xlu0 %199
        %201 = vrot.lane.b32.xlu0 %v196, 127
        %v202 = vpop.permute.xlu0 %201
        %vm203 = vcmask 1039360
        %v204 = vsel %vm203, %v200, %v202
        %206 = vrot.lane.b32.xlu0 %v195, 126
        %v207 = vpop.permute.xlu0 %206
        %208 = vrot.lane.b32.xlu0 %v196, 126
        %v209 = vpop.permute.xlu0 %208
        %vm210 = vcmask 1031168
        %v211 = vsel %vm210, %v207, %v209
        %v213 = vld [vmem:[%s1] sm:$0xff]
        %v214 = vld [vmem:[%s2] sm:$0xff]
        %216 = vset.pattern.permute.xlu0 0
        %217 = vperm.xlu0 %216, %v214
        %v218 = vpop.permute.xlu0 %217
        %vm220 = vcmask 195584
        %v222 = vsel %vm220, %v213, 0
        %224 = vmatprep.subr.mxu0 0.0
        %225 = vmatpush1.msra.mxu0 0.0
        %226 = vmatprep.subr.mxu0 0.0
        %227 = vmatpush1.msra.mxu0 0.0
        %228 = vmatprep.subr.mxu0 0.0
        %229 = vmatpush1.msra.mxu0 0.0
        %230 = vmatprep.subr.mxu0 0.0
        %231 = vmatpush1.msra.mxu0 0.0
        %232 = vmatprep.subr.mxu0 0.0
        %233 = vmatpush1.msra.mxu0 0.0
        %234 = vmatprep.subr.mxu0 0.0
        %235 = vmatpush1.msra.mxu0 0.0
        %236 = vmatprep.subr.mxu0 0.0
        %237 = vmatpush1.msra.mxu0 0.0
        %238 = vmatprep.subr.mxu0 0.0
        %239 = vmatpush1.msra.mxu0 0.0
        %240 = vmatprep.subr.mxu0 0.0
        %241 = vmatpush1.msra.mxu0 0.0
        %242 = vmatprep.subr.mxu0 0.0
        %243 = vmatpush1.msra.mxu0 0.0
        %244 = vmatprep.subr.mxu0 0.0
        %245 = vmatpush1.msra.mxu0 0.0
        %246 = vmatprep.subr.mxu0 0.0
        %247 = vmatpush1.msra.mxu0 0.0
        %248 = vmatprep.subr.mxu0 0.0
        %249 = vmatpush1.msra.mxu0 0.0
        %250 = vmatprep.subr.mxu0 0.0
        %251 = vmatpush1.msra.mxu0 %v211
        %252 = vmatprep.subr.mxu0 0.0
        %253 = vmatpush1.msra.mxu0 %v204
        %254 = vmatprep.subr.mxu0 0.0
        %255 = vmatpush1.msra.mxu0 %v195
        %256 = vmatprep.subr.mxu0 0.0
        %257 = vmatpush2.msra.mxu0 0.0
        %258 = vmatprep.subr.mxu0 0.0
        %259 = vmatpush2.msra.mxu0 0.0
        %260 = vmatprep.subr.mxu0 0.0
        %261 = vmatpush2.msra.mxu0 0.0
        %262 = vmatprep.subr.mxu0 0.0
        %263 = vmatpush2.msra.mxu0 0.0
        %264 = vmatprep.subr.mxu0 0.0
        %265 = vmatpush2.msra.mxu0 0.0
        %266 = vmatprep.subr.mxu0 0.0
        %267 = vmatpush2.msra.mxu0 0.0
        %268 = vmatprep.subr.mxu0 0.0
        %269 = vmatpush2.msra.mxu0 0.0
        %270 = vmatprep.subr.mxu0 0.0
        %271 = vmatpush2.msra.mxu0 0.0
        %272 = vmatprep.subr.mxu0 0.0
        %273 = vmatpush2.msra.mxu0 0.0
        %274 = vmatprep.subr.mxu0 0.0
        %275 = vmatpush2.msra.mxu0 0.0
        %276 = vmatprep.subr.mxu0 0.0
        %277 = vmatpush2.msra.mxu0 0.0
        %278 = vmatprep.subr.mxu0 0.0
        %279 = vmatpush2.msra.mxu0 0.0
        %280 = vmatprep.subr.mxu0 0.0
        %281 = vmatpush2.msra.mxu0 0.0
        %282 = vmatprep.subr.mxu0 0.0
        %283 = vmatpush2.msra.mxu0 0.0
        %284 = vmatprep.subr.mxu0 0.0
        %285 = vmatpush2.msra.mxu0 0.0
        %286 = vmatprep.subr.mxu0 0.0
        %287 = vmatpush2.msra.mxu0 0.0
        %288 = vmatprep.mubr.f32.mxu0 0.0
        %289 = vmatmul.mubr.f32.gmra.mxu0 %v222
        %v290 = vpop.f32.mrf.mxu0
        %v291 = vadd.f32 %v218, %v290
        %v292 = vpop.f32.mrf.mxu0
        %293 = vdwg.mxu0
        %vm294 = vcmp.ge.f32.partialorder %v291, 0.0
        %v295 = vmul.f32 %v291, 0.2
        %v296 = vsel %vm294, %v291, %v295
        %298 = vrot.lane.b32.xlu0 %v296, 3
        %v299 = vpop.permute.xlu0 %298
        %vm301 = vcmask 23552
        %v302 = vsel %vm301, 0.0, %v299
        %v303 = vsel %vm301, %v299, 0.0
        %306 = vrot.lane.b32.xlu0 %v302, 125
        %v307 = vpop.permute.xlu0 %306
        %308 = vrot.lane.b32.xlu0 %v303, 125
        %v309 = vpop.permute.xlu0 %308
        %vm310 = vcmask 1022976
        %v311 = vsel %vm310, %v307, %v309
        %313 = vrot.lane.b32.xlu0 %v302, 122
        %v314 = vpop.permute.xlu0 %313
        %315 = vrot.lane.b32.xlu0 %v303, 122
        %v316 = vpop.permute.xlu0 %315
        %vm317 = vcmask 998400
        %v318 = vsel %vm317, %v314, %v316
        %s320 = scalar_lea.vmem %s1, 8
        %v321 = vld [vmem:[%s320] sm:$0xff]
        %s322 = scalar_lea.vmem %s2, 8
        %v323 = vld [vmem:[%s322] sm:$0xff]
        %325 = vset.pattern.permute.xlu0 0
        %326 = vperm.xlu0 %325, %v323
        %v327 = vpop.permute.xlu0 %326
        %v330 = vsel %vm220, %v321, 0
        %332 = vmatprep.subr.mxu0 0.0
        %333 = vmatpush1.msra.mxu0 0.0
        %334 = vmatprep.subr.mxu0 0.0
        %335 = vmatpush1.msra.mxu0 0.0
        %336 = vmatprep.subr.mxu0 0.0
        %337 = vmatpush1.msra.mxu0 0.0
        %338 = vmatprep.subr.mxu0 0.0
        %339 = vmatpush1.msra.mxu0 0.0
        %340 = vmatprep.subr.mxu0 0.0
        %341 = vmatpush1.msra.mxu0 0.0
        %342 = vmatprep.subr.mxu0 0.0
        %343 = vmatpush1.msra.mxu0 0.0
        %344 = vmatprep.subr.mxu0 0.0
        %345 = vmatpush1.msra.mxu0 0.0
        %346 = vmatprep.subr.mxu0 0.0
        %347 = vmatpush1.msra.mxu0 0.0
        %348 = vmatprep.subr.mxu0 0.0
        %349 = vmatpush1.msra.mxu0 0.0
        %350 = vmatprep.subr.mxu0 0.0
        %351 = vmatpush1.msra.mxu0 0.0
        %352 = vmatprep.subr.mxu0 0.0
        %353 = vmatpush1.msra.mxu0 0.0
        %354 = vmatprep.subr.mxu0 0.0
        %355 = vmatpush1.msra.mxu0 0.0
        %356 = vmatprep.subr.mxu0 0.0
        %357 = vmatpush1.msra.mxu0 0.0
        %358 = vmatprep.subr.mxu0 0.0
        %359 = vmatpush1.msra.mxu0 %v318
        %360 = vmatprep.subr.mxu0 0.0
        %361 = vmatpush1.msra.mxu0 %v311
        %362 = vmatprep.subr.mxu0 0.0
        %363 = vmatpush1.msra.mxu0 %v302
        %364 = vmatprep.subr.mxu0 0.0
        %365 = vmatpush2.msra.mxu0 0.0
        %366 = vmatprep.subr.mxu0 0.0
        %367 = vmatpush2.msra.mxu0 0.0
        %368 = vmatprep.subr.mxu0 0.0
        %369 = vmatpush2.msra.mxu0 0.0
        %370 = vmatprep.subr.mxu0 0.0
        %371 = vmatpush2.msra.mxu0 0.0
        %372 = vmatprep.subr.mxu0 0.0
        %373 = vmatpush2.msra.mxu0 0.0
        %374 = vmatprep.subr.mxu0 0.0
        %375 = vmatpush2.msra.mxu0 0.0
        %376 = vmatprep.subr.mxu0 0.0
        %377 = vmatpush2.msra.mxu0 0.0
        %378 = vmatprep.subr.mxu0 0.0
        %379 = vmatpush2.msra.mxu0 0.0
        %380 = vmatprep.subr.mxu0 0.0
        %381 = vmatpush2.msra.mxu0 0.0
        %382 = vmatprep.subr.mxu0 0.0
        %383 = vmatpush2.msra.mxu0 0.0
        %384 = vmatprep.subr.mxu0 0.0
        %385 = vmatpush2.msra.mxu0 0.0
        %386 = vmatprep.subr.mxu0 0.0
        %387 = vmatpush2.msra.mxu0 0.0
        %388 = vmatprep.subr.mxu0 0.0
        %389 = vmatpush2.msra.mxu0 0.0
        %390 = vmatprep.subr.mxu0 0.0
        %391 = vmatpush2.msra.mxu0 0.0
        %392 = vmatprep.subr.mxu0 0.0
        %393 = vmatpush2.msra.mxu0 0.0
        %394 = vmatprep.subr.mxu0 0.0
        %395 = vmatpush2.msra.mxu0 0.0
        %396 = vmatprep.mubr.f32.mxu0 0.0
        %397 = vmatmul.mubr.f32.gmra.mxu0 %v330
        %v398 = vpop.f32.mrf.mxu0
        %v399 = vadd.f32 %v327, %v398
        %v400 = vpop.f32.mrf.mxu0
        %401 = vdwg.mxu0
        %v402 = vadd.f32 %v186, %v399
        %vm403 = vcmp.ge.f32.partialorder %v402, 0.0
        %v404 = vmul.f32 %v402, 0.2
        %v405 = vsel %vm403, %v402, %v404
        %407 = vrot.lane.b32.xlu0 %v405, 1
        %v408 = vpop.permute.xlu0 %407
        %v410 = vsel %vm194, 0.0, %v408
        %v411 = vsel %vm194, %v408, 0.0
        %414 = vrot.lane.b32.xlu0 %v410, 127
        %v415 = vpop.permute.xlu0 %414
        %416 = vrot.lane.b32.xlu0 %v411, 127
        %v417 = vpop.permute.xlu0 %416
        %v418 = vsel %vm203, %v415, %v417
        %420 = vrot.lane.b32.xlu0 %v410, 126
        %v421 = vpop.permute.xlu0 %420
        %422 = vrot.lane.b32.xlu0 %v411, 126
        %v423 = vpop.permute.xlu0 %422
        %v424 = vsel %vm210, %v421, %v423
        %s426 = scalar_lea.vmem %s1, 16
        %v427 = vld [vmem:[%s426] sm:$0xff]
        %s428 = scalar_lea.vmem %s2, 16
        %v429 = vld [vmem:[%s428] sm:$0xff]
        %431 = vset.pattern.permute.xlu0 0
        %432 = vperm.xlu0 %431, %v429
        %v433 = vpop.permute.xlu0 %432
        %v436 = vsel %vm220, %v427, 0
        %438 = vmatprep.subr.mxu0 0.0
        %439 = vmatpush1.msra.mxu0 0.0
        %440 = vmatprep.subr.mxu0 0.0
        %441 = vmatpush1.msra.mxu0 0.0
        %442 = vmatprep.subr.mxu0 0.0
        %443 = vmatpush1.msra.mxu0 0.0
        %444 = vmatprep.subr.mxu0 0.0
        %445 = vmatpush1.msra.mxu0 0.0
        %446 = vmatprep.subr.mxu0 0.0
        %447 = vmatpush1.msra.mxu0 0.0
        %448 = vmatprep.subr.mxu0 0.0
        %449 = vmatpush1.msra.mxu0 0.0
        %450 = vmatprep.subr.mxu0 0.0
        %451 = vmatpush1.msra.mxu0 0.0
        %452 = vmatprep.subr.mxu0 0.0
        %453 = vmatpush1.msra.mxu0 0.0
        %454 = vmatprep.subr.mxu0 0.0
        %455 = vmatpush1.msra.mxu0 0.0
        %456 = vmatprep.subr.mxu0 0.0
        %457 = vmatpush1.msra.mxu0 0.0
        %458 = vmatprep.subr.mxu0 0.0
        %459 = vmatpush1.msra.mxu0 0.0
        %460 = vmatprep.subr.mxu0 0.0
        %461 = vmatpush1.msra.mxu0 0.0
        %462 = vmatprep.subr.mxu0 0.0
        %463 = vmatpush1.msra.mxu0 0.0
        %464 = vmatprep.subr.mxu0 0.0
        %465 = vmatpush1.msra.mxu0 %v424
        %466 = vmatprep.subr.mxu0 0.0
        %467 = vmatpush1.msra.mxu0 %v418
        %468 = vmatprep.subr.mxu0 0.0
        %469 = vmatpush1.msra.mxu0 %v410
        %470 = vmatprep.subr.mxu0 0.0
        %471 = vmatpush2.msra.mxu0 0.0
        %472 = vmatprep.subr.mxu0 0.0
        %473 = vmatpush2.msra.mxu0 0.0
        %474 = vmatprep.subr.mxu0 0.0
        %475 = vmatpush2.msra.mxu0 0.0
        %476 = vmatprep.subr.mxu0 0.0
        %477 = vmatpush2.msra.mxu0 0.0
        %478 = vmatprep.subr.mxu0 0.0
        %479 = vmatpush2.msra.mxu0 0.0
        %480 = vmatprep.subr.mxu0 0.0
        %481 = vmatpush2.msra.mxu0 0.0
        %482 = vmatprep.subr.mxu0 0.0
        %483 = vmatpush2.msra.mxu0 0.0
        %484 = vmatprep.subr.mxu0 0.0
        %485 = vmatpush2.msra.mxu0 0.0
        %486 = vmatprep.subr.mxu0 0.0
        %487 = vmatpush2.msra.mxu0 0.0
        %488 = vmatprep.subr.mxu0 0.0
        %489 = vmatpush2.msra.mxu0 0.0
        %490 = vmatprep.subr.mxu0 0.0
        %491 = vmatpush2.msra.mxu0 0.0
        %492 = vmatprep.subr.mxu0 0.0
        %493 = vmatpush2.msra.mxu0 0.0
        %494 = vmatprep.subr.mxu0 0.0
        %495 = vmatpush2.msra.mxu0 0.0
        %496 = vmatprep.subr.mxu0 0.0
        %497 = vmatpush2.msra.mxu0 0.0
        %498 = vmatprep.subr.mxu0 0.0
        %499 = vmatpush2.msra.mxu0 0.0
        %500 = vmatprep.subr.mxu0 0.0
        %501 = vmatpush2.msra.mxu0 0.0
        %502 = vmatprep.mubr.f32.mxu0 0.0
        %503 = vmatmul.mubr.f32.gmra.mxu0 %v436
        %v504 = vpop.f32.mrf.mxu0
        %v505 = vadd.f32 %v433, %v504
        %v506 = vpop.f32.mrf.mxu0
        %507 = vdwg.mxu0
        %vm508 = vcmp.ge.f32.partialorder %v505, 0.0
        %v509 = vmul.f32 %v505, 0.2
        %v510 = vsel %vm508, %v505, %v509
        %512 = vrot.lane.b32.xlu0 %v510, 3
        %v513 = vpop.permute.xlu0 %512
        %v515 = vsel %vm301, 0.0, %v513
        %v516 = vsel %vm301, %v513, 0.0
        %519 = vrot.lane.b32.xlu0 %v515, 125
        %v520 = vpop.permute.xlu0 %519
        %521 = vrot.lane.b32.xlu0 %v516, 125
        %v522 = vpop.permute.xlu0 %521
        %v523 = vsel %vm310, %v520, %v522
        %525 = vrot.lane.b32.xlu0 %v515, 122
        %v526 = vpop.permute.xlu0 %525
        %527 = vrot.lane.b32.xlu0 %v516, 122
        %v528 = vpop.permute.xlu0 %527
        %v529 = vsel %vm317, %v526, %v528
        %s531 = scalar_lea.vmem %s1, 24
        %v532 = vld [vmem:[%s531] sm:$0xff]
        %s533 = scalar_lea.vmem %s2, 24
        %v534 = vld [vmem:[%s533] sm:$0xff]
        %536 = vset.pattern.permute.xlu0 0
        %537 = vperm.xlu0 %536, %v534
        %v538 = vpop.permute.xlu0 %537
        %v541 = vsel %vm220, %v532, 0
        %543 = vmatprep.subr.mxu0 0.0
        %544 = vmatpush1.msra.mxu0 0.0
        %545 = vmatprep.subr.mxu0 0.0
        %546 = vmatpush1.msra.mxu0 0.0
        %547 = vmatprep.subr.mxu0 0.0
        %548 = vmatpush1.msra.mxu0 0.0
        %549 = vmatprep.subr.mxu0 0.0
        %550 = vmatpush1.msra.mxu0 0.0
        %551 = vmatprep.subr.mxu0 0.0
        %552 = vmatpush1.msra.mxu0 0.0
        %553 = vmatprep.subr.mxu0 0.0
        %554 = vmatpush1.msra.mxu0 0.0
        %555 = vmatprep.subr.mxu0 0.0
        %556 = vmatpush1.msra.mxu0 0.0
        %557 = vmatprep.subr.mxu0 0.0
        %558 = vmatpush1.msra.mxu0 0.0
        %559 = vmatprep.subr.mxu0 0.0
        %560 = vmatpush1.msra.mxu0 0.0
        %561 = vmatprep.subr.mxu0 0.0
        %562 = vmatpush1.msra.mxu0 0.0
        %563 = vmatprep.subr.mxu0 0.0
        %564 = vmatpush1.msra.mxu0 0.0
        %565 = vmatprep.subr.mxu0 0.0
        %566 = vmatpush1.msra.mxu0 0.0
        %567 = vmatprep.subr.mxu0 0.0
        %568 = vmatpush1.msra.mxu0 0.0
        %569 = vmatprep.subr.mxu0 0.0
        %570 = vmatpush1.msra.mxu0 %v529
        %571 = vmatprep.subr.mxu0 0.0
        %572 = vmatpush1.msra.mxu0 %v523
        %573 = vmatprep.subr.mxu0 0.0
        %574 = vmatpush1.msra.mxu0 %v515
        %575 = vmatprep.subr.mxu0 0.0
        %576 = vmatpush2.msra.mxu0 0.0
        %577 = vmatprep.subr.mxu0 0.0
        %578 = vmatpush2.msra.mxu0 0.0
        %579 = vmatprep.subr.mxu0 0.0
        %580 = vmatpush2.msra.mxu0 0.0
        %581 = vmatprep.subr.mxu0 0.0
        %582 = vmatpush2.msra.mxu0 0.0
        %583 = vmatprep.subr.mxu0 0.0
        %584 = vmatpush2.msra.mxu0 0.0
        %585 = vmatprep.subr.mxu0 0.0
        %586 = vmatpush2.msra.mxu0 0.0
        %587 = vmatprep.subr.mxu0 0.0
        %588 = vmatpush2.msra.mxu0 0.0
        %589 = vmatprep.subr.mxu0 0.0
        %590 = vmatpush2.msra.mxu0 0.0
        %591 = vmatprep.subr.mxu0 0.0
        %592 = vmatpush2.msra.mxu0 0.0
        %593 = vmatprep.subr.mxu0 0.0
        %594 = vmatpush2.msra.mxu0 0.0
        %595 = vmatprep.subr.mxu0 0.0
        %596 = vmatpush2.msra.mxu0 0.0
        %597 = vmatprep.subr.mxu0 0.0
        %598 = vmatpush2.msra.mxu0 0.0
        %599 = vmatprep.subr.mxu0 0.0
        %600 = vmatpush2.msra.mxu0 0.0
        %601 = vmatprep.subr.mxu0 0.0
        %602 = vmatpush2.msra.mxu0 0.0
        %603 = vmatprep.subr.mxu0 0.0
        %604 = vmatpush2.msra.mxu0 0.0
        %605 = vmatprep.subr.mxu0 0.0
        %606 = vmatpush2.msra.mxu0 0.0
        %607 = vmatprep.mubr.f32.mxu0 0.0
        %608 = vmatmul.mubr.f32.gmra.mxu0 %v541
        %v609 = vpop.f32.mrf.mxu0
        %v610 = vadd.f32 %v538, %v609
        %v611 = vpop.f32.mrf.mxu0
        %612 = vdwg.mxu0
        %v613 = vadd.f32 %v402, %v610
        %614 = vst [vmem:[%s185] sm:$0xff] %v613
        %s615 = sand.u32 %s96, 1
        %s616 = scalar_lea.sflag [#allocation4], %s615
        %s617 = sand.u32 %s96, 1
        %s618 = smul.addr %s617, 8
        %s619 = scalar_lea.vmem [#allocation5], %s618
        // Predicated region
        $region37: #{tpu_custom_call.1} parent=31 // pred_check
          %p620 = pneg %p106
        $region38: #{tpu_custom_call.1} parent=31 // pred_check_branch
          %622 = sbr.rel (%p620) target = $region40
        $region39: #{tpu_custom_call.1} parent=31 // pred_region
          %s624 = ssub.s32 128, 128
          %625 = vsyncadd %s616, %s624
          %s626 = smul.addr %s20, 128
          %s627 = scalar_lea.hbm %s3, %s626
          %s629 = sshll.u32 %s619, 4
          %s630 = int_to_ptr.vmem [resolvable:$true] %s629
          %632 = dma.vmem_to_hbm [thread:$0]  %s630, 128, %s627, %s616
        $region40: #{tpu_custom_call.1} parent=31 // pred_fallthru
          _
      $region32: #{tpu_custom_call.1} parent=5 // pred_fallthru
        _
      %p633 = scmp.le.s32.totalorder 2, %s15
      // Predicated region
      $region41: #{tpu_custom_call.1} parent=5 // pred_check
        %p634 = pneg %p633
      $region42: #{tpu_custom_call.1} parent=5 // pred_check_branch
        %636 = sbr.rel (%p634) target = $region44
      $region43: #{tpu_custom_call.1} parent=5 // pred_region
        %s637 = ssub.s32 %s15, 2
        // Predicated region
        $region45: #{tpu_custom_call.1} parent=43 // pred_check
          %p638 = pneg %p112
        $region46: #{tpu_custom_call.1} parent=43 // pred_check_branch
          %640 = sbr.rel (%p638) target = $region48
        $region47: #{tpu_custom_call.1} parent=43 // pred_region
          %s641 = sand.u32 %s97, 1
          %s642 = scalar_lea.sflag [#allocation4], %s641
          %s643 = sand.u32 %s97, 1
          %s644 = smul.addr %s643, 8
          %s645 = scalar_lea.vmem [#allocation5], %s644
          %646 = dma.done %s642, 128
        $region48: #{tpu_custom_call.1} parent=43 // pred_fallthru
          _
      $region44: #{tpu_custom_call.1} parent=5 // pred_fallthru
        _
    $region6: #{tpu_custom_call.1} parent=1 // loop_footer
      %s19 = sadd.s32 1, %s15
    $region7: #{tpu_custom_call.1} parent=1 // loop_footer_branch
      %14 = sbr.rel target = $region3
    $region8: #{tpu_custom_call.1} parent=1 // loop_exit
      _
    %647 = vsyncpa [#allocation3], 1
    %s648 = scalar_lea.sflag [#allocation3], 1
    %649 = vsyncpa %s648, 1
    %650 = vsyncpa [#allocation4], 1
    %s651 = scalar_lea.sflag [#allocation4], 1
    %652 = vsyncpa %s651, 1

</llo_original>
